<compile_context>
chip_gen: v5e
topology: v5e:2x2
jax: 0.10.0
libtpu: 0.0.40
codegen_flags: <defaults>
</compile_context>

<pallas_src>
import functools

import jax
import jax.numpy as jnp
from jax.experimental import pallas as pl
from jax.experimental.pallas import tpu as pltpu

_SUBLANE = 8                        # f32 sublane granularity
_VMEM_BUDGET = 24 * 1024 * 1024     # tile budget (headroom for v7x's 64 MiB VMEM)
_VMEM_LIMIT = 32 * 1024 * 1024      # explicit scoped-VMEM limit


def _round_up(n, m):
    return ((n + m - 1) // m) * m


def mlp_kernel(x_ref, w1_ref, b1_ref, w2_ref, b2_ref, w3_ref, b3_ref, o_ref):
    """3-layer MLP: Linear+ReLU, Linear+ReLU, Linear (no final activation).

    All-f32 math: the kernel is memory-bound with large MXU slack, so f32
    matmuls are free in wall-clock and keep full fidelity vs. the PyTorch
    module.  Output store is narrow (n_out lanes) -- masked vst, but 8x fewer
    HBM bytes than a 128-lane padded slab (note: relatively more expensive on
    v5e's single store slot, still a clear net win).
    """
    h = jnp.dot(x_ref[...], w1_ref[...], preferred_element_type=jnp.float32)
    h = jnp.maximum(h + b1_ref[...], 0.0)
    h = jnp.dot(h, w2_ref[...], preferred_element_type=jnp.float32)
    h = jnp.maximum(h + b2_ref[...], 0.0)
    o = jnp.dot(h, w3_ref[...], preferred_element_type=jnp.float32)
    o_ref[...] = (o + b3_ref[...]).astype(o_ref.dtype)


@functools.partial(jax.jit, static_argnames="block_batch")
def _mlp_forward(x, params, block_batch):
    (w1, b1), (w2, b2), (w3, b3) = params
    x = x.astype(jnp.float32)
    w1 = w1.astype(jnp.float32); b1 = b1.astype(jnp.float32)
    w2 = w2.astype(jnp.float32); b2 = b2.astype(jnp.float32)
    w3 = w3.astype(jnp.float32); b3 = b3.astype(jnp.float32)

    batch, n_in = x.shape
    h1 = w1.shape[1]
    h2 = w2.shape[1]
    n_out = w3.shape[1]

    # --- Batch tile selection -------------------------------------------
    if batch <= _SUBLANE:
        tb = batch                          # block == full array dim (legal)
    else:
        tb = _round_up(min(block_batch, batch), _SUBLANE)
        # Keep >= 2 grid steps so v7x's two TensorCores both get work.
        if pl.cdiv(batch, tb) < 2:
            tb = _round_up(pl.cdiv(batch, 2), _SUBLANE)
        # Double-buffered x/out tiles + resident weights must fit the budget.
        weight_bytes = 2 * 4 * (w1.size + b1.size + w2.size + b2.size
                                + w3.size + b3.size)
        while tb > _SUBLANE and (
                2 * 4 * tb * (n_in + n_out) + weight_bytes) > _VMEM_BUDGET:
            tb = _round_up(tb // 2, _SUBLANE)

    grid = (pl.cdiv(batch, tb),)            # ragged last tile: OOB rows masked
    resident = lambda a: pl.BlockSpec(a.shape, lambda i: (0, 0))

    flops = 2 * batch * (n_in * h1 + h1 * h2 + h2 * n_out)
    bytes_accessed = 4 * (x.size + w1.size + b1.size + w2.size + b2.size
                          + w3.size + b3.size + batch * n_out)

    return pl.pallas_call(
        mlp_kernel,
        out_shape=jax.ShapeDtypeStruct((batch, n_out), jnp.float32),
        grid=grid,
        in_specs=[
            pl.BlockSpec((tb, n_in), lambda i: (i, 0)),   # x streams per tile
            resident(w1), resident(b1),                   # weights/biases DMA'd
            resident(w2), resident(b2),                   # once, VMEM-resident
            resident(w3), resident(b3),
        ],
        out_specs=pl.BlockSpec((tb, n_out), lambda i: (i, 0)),
        compiler_params=pltpu.CompilerParams(
            dimension_semantics=("parallel",),            # megacore on v7x
            vmem_limit_bytes=_VMEM_LIMIT),
        cost_estimate=pl.CostEstimate(
            flops=flops, transcendentals=0, bytes_accessed=bytes_accessed),
    )(x, w1, b1, w2, b2, w3, b3)


def net_forward(x, t, params, *, block_batch=2048):
    """Pallas equivalent of Net.forward(x, t). `t` (task id) is unused."""
    del t
    return _mlp_forward(x, params, block_batch)


def init_linear(key, fan_in, fan_out):
    """Deterministic init mimicking torch.nn.Linear (uniform +-1/sqrt(fan_in)).
    Weight stored as (in, out)."""
    kw, kb = jax.random.split(key)
    bound = 1.0 / (fan_in ** 0.5)
    w = jax.random.uniform(kw, (fan_in, fan_out), jnp.float32, -bound, bound)
    b = jax.random.uniform(kb, (1, fan_out), jnp.float32, -bound, bound)
    return w, b


def reference_forward(x, params):
    """Pure-f32 reference matching the PyTorch module."""
    (w1, b1), (w2, b2), (w3, b3) = params
    h = jnp.maximum(x @ w1 + b1, 0.0)
    h = jnp.maximum(h @ w2 + b2, 0.0)
    return h @ w3 + b3


if __name__ == "__main__":
    # Shapes consistent with the module: args.hidden_layers = "64-64".
    # batch=300 is deliberately NOT a multiple of the batch tile so the
    # cdiv-grid edge-tile masking path is exercised (grid = 2 steps of 152).
    n_inputs, hidden, n_outputs = 32, [64, 64], 16
    batch = 300

    key = jax.random.PRNGKey(0)
    k_x, k1, k2, k3 = jax.random.split(key, 4)

    sizes = [n_inputs] + hidden + [n_outputs]
    params = [
        init_linear(k1, sizes[0], sizes[1]),
        init_linear(k2, sizes[1], sizes[2]),
        init_linear(k3, sizes[2], sizes[3]),
    ]

    x = jax.random.normal(k_x, (batch, n_inputs), jnp.float32)
    t = 0  # task id, ignored by forward

    out = jax.block_until_ready(net_forward(x, t, params))
    assert out.shape == (batch, n_outputs)
    assert out.dtype == jnp.float32

    # All-f32 kernel matches the torch-equivalent f32 reference tightly.
    ref = reference_forward(x, params)
    err = float(jnp.max(jnp.abs(out - ref)))
    assert jnp.allclose(out, ref, atol=5e-3, rtol=5e-3), err

    print("KERNEL_OK")
</pallas_src>

<mosaic_0001>
module attributes {stable_mosaic.version = 11 : i64} {
  func.func @mlp_kernel(%arg0: i32, %arg1: memref<152x32xf32, #tpu.memory_space<vmem>>, %arg2: memref<32x64xf32, #tpu.memory_space<vmem>>, %arg3: memref<1x64xf32, #tpu.memory_space<vmem>>, %arg4: memref<64x64xf32, #tpu.memory_space<vmem>>, %arg5: memref<1x64xf32, #tpu.memory_space<vmem>>, %arg6: memref<64x16xf32, #tpu.memory_space<vmem>>, %arg7: memref<1x16xf32, #tpu.memory_space<vmem>>, %arg8: memref<152x16xf32, #tpu.memory_space<vmem>>) attributes {dimension_semantics = [#tpu.dimension_semantics<parallel>], iteration_bounds = array<i64: 2>, scalar_prefetch = 0 : i64, scratch_operands = 0 : i64, tpu.core_type = #tpu.core_type<tc>, window_params = [{transform_indices = @transform_0, window_bounds = array<i64: 152, 32>}, {pipeline_mode = #tpu.pipeline_mode<synchronous>, transform_indices = @transform_1, window_bounds = array<i64: 32, 64>}, {pipeline_mode = #tpu.pipeline_mode<synchronous>, transform_indices = @transform_2, window_bounds = array<i64: 1, 64>}, {pipeline_mode = #tpu.pipeline_mode<synchronous>, transform_indices = @transform_3, window_bounds = array<i64: 64, 64>}, {pipeline_mode = #tpu.pipeline_mode<synchronous>, transform_indices = @transform_4, window_bounds = array<i64: 1, 64>}, {pipeline_mode = #tpu.pipeline_mode<synchronous>, transform_indices = @transform_5, window_bounds = array<i64: 64, 16>}, {pipeline_mode = #tpu.pipeline_mode<synchronous>, transform_indices = @transform_6, window_bounds = array<i64: 1, 16>}, {transform_indices = @transform_7, window_bounds = array<i64: 152, 16>}]} {
    %c0 = arith.constant 0 : index
    %c0_0 = arith.constant 0 : index
    %0 = vector.load %arg1[%c0, %c0_0] : memref<152x32xf32, #tpu.memory_space<vmem>>, vector<152x32xf32>
    %c0_1 = arith.constant 0 : index
    %c0_2 = arith.constant 0 : index
    %1 = vector.load %arg2[%c0_1, %c0_2] : memref<32x64xf32, #tpu.memory_space<vmem>>, vector<32x64xf32>
    %cst = arith.constant dense<0.000000e+00> : vector<152x64xf32>
    %2 = tpu.matmul %0, %1, %cst {dimension_numbers = #tpu.dot_dimension_numbers<[1], [0], [0], [1], [0, 0, 1, 1], [], []>} : vector<152x32xf32>, vector<32x64xf32>, vector<152x64xf32> -> vector<152x64xf32>
    %c0_3 = arith.constant 0 : index
    %c0_4 = arith.constant 0 : index
    %3 = vector.load %arg3[%c0_3, %c0_4] : memref<1x64xf32, #tpu.memory_space<vmem>>, vector<1x64xf32>
    %4 = vector.broadcast %3 : vector<1x64xf32> to vector<152x64xf32>
    %5 = arith.addf %2, %4 : vector<152x64xf32>
    %cst_5 = arith.constant 0.000000e+00 : f32
    %6 = vector.broadcast %cst_5 : f32 to vector<152x64xf32>
    %7 = arith.maximumf %5, %6 : vector<152x64xf32>
    %c0_6 = arith.constant 0 : index
    %c0_7 = arith.constant 0 : index
    %8 = vector.load %arg4[%c0_6, %c0_7] : memref<64x64xf32, #tpu.memory_space<vmem>>, vector<64x64xf32>
    %cst_8 = arith.constant dense<0.000000e+00> : vector<152x64xf32>
    %9 = tpu.matmul %7, %8, %cst_8 {dimension_numbers = #tpu.dot_dimension_numbers<[1], [0], [0], [1], [0, 0, 1, 1], [], []>} : vector<152x64xf32>, vector<64x64xf32>, vector<152x64xf32> -> vector<152x64xf32>
    %c0_9 = arith.constant 0 : index
    %c0_10 = arith.constant 0 : index
    %10 = vector.load %arg5[%c0_9, %c0_10] : memref<1x64xf32, #tpu.memory_space<vmem>>, vector<1x64xf32>
    %11 = vector.broadcast %10 : vector<1x64xf32> to vector<152x64xf32>
    %12 = arith.addf %9, %11 : vector<152x64xf32>
    %cst_11 = arith.constant 0.000000e+00 : f32
    %13 = vector.broadcast %cst_11 : f32 to vector<152x64xf32>
    %14 = arith.maximumf %12, %13 : vector<152x64xf32>
    %c0_12 = arith.constant 0 : index
    %c0_13 = arith.constant 0 : index
    %15 = vector.load %arg6[%c0_12, %c0_13] : memref<64x16xf32, #tpu.memory_space<vmem>>, vector<64x16xf32>
    %cst_14 = arith.constant dense<0.000000e+00> : vector<152x16xf32>
    %16 = tpu.matmul %14, %15, %cst_14 {dimension_numbers = #tpu.dot_dimension_numbers<[1], [0], [0], [1], [0, 0, 1, 1], [], []>} : vector<152x64xf32>, vector<64x16xf32>, vector<152x16xf32> -> vector<152x16xf32>
    %c0_15 = arith.constant 0 : index
    %c0_16 = arith.constant 0 : index
    %17 = vector.load %arg7[%c0_15, %c0_16] : memref<1x16xf32, #tpu.memory_space<vmem>>, vector<1x16xf32>
    %18 = vector.broadcast %17 : vector<1x16xf32> to vector<152x16xf32>
    %19 = arith.addf %16, %18 : vector<152x16xf32>
    %c0_17 = arith.constant 0 : index
    %c0_18 = arith.constant 0 : index
    %20 = vector.load %arg8[%c0_17, %c0_18] : memref<152x16xf32, #tpu.memory_space<vmem>>, vector<152x16xf32>
    tpu.vector_store %arg8[%c0_17, %c0_18], %19 {strides = array<i32>} : memref<152x16xf32, #tpu.memory_space<vmem>>, vector<152x16xf32>,
    return
  }
  func.func @transform_0(%arg0: i32) -> (i32, i32) {
    %c0_i32 = arith.constant 0 : i32
    %c0_i32_0 = arith.constant 0 : i32
    return %arg0, %c0_i32 : i32, i32
  }
  func.func @transform_1(%arg0: i32) -> (i32, i32) {
    %c0_i32 = arith.constant 0 : i32
    %c0_i32_0 = arith.constant 0 : i32
    %c0_i32_1 = arith.constant 0 : i32
    return %c0_i32, %c0_i32_0 : i32, i32
  }
  func.func @transform_2(%arg0: i32) -> (i32, i32) {
    %c0_i32 = arith.constant 0 : i32
    %c0_i32_0 = arith.constant 0 : i32
    %c0_i32_1 = arith.constant 0 : i32
    return %c0_i32, %c0_i32_0 : i32, i32
  }
  func.func @transform_3(%arg0: i32) -> (i32, i32) {
    %c0_i32 = arith.constant 0 : i32
    %c0_i32_0 = arith.constant 0 : i32
    %c0_i32_1 = arith.constant 0 : i32
    return %c0_i32, %c0_i32_0 : i32, i32
  }
  func.func @transform_4(%arg0: i32) -> (i32, i32) {
    %c0_i32 = arith.constant 0 : i32
    %c0_i32_0 = arith.constant 0 : i32
    %c0_i32_1 = arith.constant 0 : i32
    return %c0_i32, %c0_i32_0 : i32, i32
  }
  func.func @transform_5(%arg0: i32) -> (i32, i32) {
    %c0_i32 = arith.constant 0 : i32
    %c0_i32_0 = arith.constant 0 : i32
    %c0_i32_1 = arith.constant 0 : i32
    return %c0_i32, %c0_i32_0 : i32, i32
  }
  func.func @transform_6(%arg0: i32) -> (i32, i32) {
    %c0_i32 = arith.constant 0 : i32
    %c0_i32_0 = arith.constant 0 : i32
    %c0_i32_1 = arith.constant 0 : i32
    return %c0_i32, %c0_i32_0 : i32, i32
  }
  func.func @transform_7(%arg0: i32) -> (i32, i32) {
    %c0_i32 = arith.constant 0 : i32
    %c0_i32_0 = arith.constant 0 : i32
    return %arg0, %c0_i32 : i32, i32
  }
}

</mosaic_0001>

<llo_original>
// kernel: _mlp_forward.1
$region0: #{_mlp_forward.1}
  #allocation0 [shape = 'u32[]', space=smem, size = 0x4, offset = 0x4, fixed_abs, tag = 'smem constant byte address 0x4 - core index']
  #allocation1 [shape = 'u32[72,128]{1,0:T(1,128)}', space=vmem, size = 0x9000, scoped, tag = 'internal scratch']
  %s0 = inlined_call_operand.vmem [shape: f32[300,32], index: 0, kind: input, shape index: {}]
  %s1 = inlined_call_operand.vmem [shape: f32[32,64], index: 1, kind: input, shape index: {}]
  %s2 = inlined_call_operand.vmem [shape: f32[1,64], index: 2, kind: input, shape index: {}]
  %s3 = inlined_call_operand.vmem [shape: f32[64,64], index: 3, kind: input, shape index: {}]
  %s4 = inlined_call_operand.vmem [shape: f32[1,64], index: 4, kind: input, shape index: {}]
  %s5 = inlined_call_operand.vmem [shape: f32[64,16], index: 5, kind: input, shape index: {}]
  %s6 = inlined_call_operand.vmem [shape: f32[1,16], index: 6, kind: input, shape index: {}]
  %s7 = inlined_call_operand.vmem [shape: f32[300,16], index: 7, kind: output, shape index: {}]
  %s8 = sld [smem:[#allocation0]]
  $region61: #{_mlp_forward.1} parent=0
    _
  %s10 = ssub.s32 1, %s8
  %s11 = scalar_select 0, %s10, %s8
  loop: start=0, step=1, limit=4
  $region2: #{_mlp_forward.1} parent=0 // loop_pre_header
    _
  $region3: #{_mlp_forward.1} parent=0 // loop_header
    %s13 = sphi 0, %s17
    %p14 = scmp.ge.s32.totalorder %s13, 4
    %s23 = sphi 0, %s25
    %s26 = sphi 0, %s23
    %s27 = sphi 0, %s26
    %s43 = sphi 0, %s27
    %s47 = sphi 0, %s47
    %s49 = sphi 0, %s47
    %s50 = sphi 0, %s49
    %s64 = sphi 0, %s50
    %s68 = sphi 0, %s68
    %s70 = sphi 0, %s68
    %s71 = sphi 0, %s70
    %s85 = sphi 0, %s71
    %s89 = sphi 0, %s89
    %s91 = sphi 0, %s89
    %s92 = sphi 0, %s91
    %s106 = sphi 0, %s92
    %s110 = sphi 0, %s110
    %s112 = sphi 0, %s110
    %s113 = sphi 0, %s112
    %s127 = sphi 0, %s113
    %s131 = sphi 0, %s131
    %s133 = sphi 0, %s131
    %s134 = sphi 0, %s133
    %s148 = sphi 0, %s134
    %s152 = sphi 0, %s152
    %s154 = sphi 0, %s152
    %s155 = sphi 0, %s154
    %s169 = sphi 0, %s155
    %s175 = sphi 0, %s177
    %s178 = sphi 0, %s175
    %s179 = sphi 0, %s178
    %s195 = sphi 0, %s179
  $region4: #{_mlp_forward.1} parent=0 // loop_header_branch
    %16 = sbr.rel (%p14) target = $region8
  $region5: #{_mlp_forward.1} parent=0 // loop_body
    %s18 = ssub.s32 %s13, 1
    %s19 = ssub.s32 %s13, 2
    %s20 = sadd.s32 %s13, 1
    %s21 = ssub.s32 %s13, %s20
    %p22 = scmp.eq.s32.totalorder %s21, 0
    %s24 = sadd.s32 %s23, 1
    %s25 = scalar_select %p22, %s23, %s24
    %p28 = pneg %p22
    %p29 = scmp.eq.s32.totalorder %s13, 1
    %p30 = por %p28, %p29
    %p31 = scmp.ne.s32.totalorder %s23, %s26
    %p32 = scmp.eq.s32.totalorder %s13, 0
    %p33 = por %p31, %p32
    %p34 = scmp.ne.s32.totalorder %s23, %s26
    %p35 = scmp.eq.s32.totalorder %s18, 1
    %p36 = por %p34, %p35
    %p37 = scmp.ne.s32.totalorder %s26, %s27
    %p38 = scmp.eq.s32.totalorder %s18, 0
    %p39 = por %p37, %p38
    %p40 = scmp.ne.s32.totalorder %s26, %s27
    %p41 = scmp.eq.s32.totalorder %s19, 1
    %p42 = por %p40, %p41
    %p44 = scmp.ne.s32.totalorder %s27, %s43
    %p45 = scmp.eq.s32.totalorder %s19, 0
    %p46 = por %p44, %p45
    %s48 = sadd.s32 %s47, 1
    %p51 = scmp.eq.s32.totalorder %s13, 1
    %p52 = scmp.ne.s32.totalorder %s47, %s49
    %p53 = scmp.eq.s32.totalorder %s13, 0
    %p54 = por %p52, %p53
    %p55 = scmp.ne.s32.totalorder %s47, %s49
    %p56 = scmp.eq.s32.totalorder %s18, 1
    %p57 = por %p55, %p56
    %p58 = scmp.ne.s32.totalorder %s49, %s50
    %p59 = scmp.eq.s32.totalorder %s18, 0
    %p60 = por %p58, %p59
    %p61 = scmp.ne.s32.totalorder %s49, %s50
    %p62 = scmp.eq.s32.totalorder %s19, 1
    %p63 = por %p61, %p62
    %p65 = scmp.ne.s32.totalorder %s50, %s64
    %p66 = scmp.eq.s32.totalorder %s19, 0
    %p67 = por %p65, %p66
    %s69 = sadd.s32 %s68, 1
    %p72 = scmp.eq.s32.totalorder %s13, 1
    %p73 = scmp.ne.s32.totalorder %s68, %s70
    %p74 = scmp.eq.s32.totalorder %s13, 0
    %p75 = por %p73, %p74
    %p76 = scmp.ne.s32.totalorder %s68, %s70
    %p77 = scmp.eq.s32.totalorder %s18, 1
    %p78 = por %p76, %p77
    %p79 = scmp.ne.s32.totalorder %s70, %s71
    %p80 = scmp.eq.s32.totalorder %s18, 0
    %p81 = por %p79, %p80
    %p82 = scmp.ne.s32.totalorder %s70, %s71
    %p83 = scmp.eq.s32.totalorder %s19, 1
    %p84 = por %p82, %p83
    %p86 = scmp.ne.s32.totalorder %s71, %s85
    %p87 = scmp.eq.s32.totalorder %s19, 0
    %p88 = por %p86, %p87
    %s90 = sadd.s32 %s89, 1
    %p93 = scmp.eq.s32.totalorder %s13, 1
    %p94 = scmp.ne.s32.totalorder %s89, %s91
    %p95 = scmp.eq.s32.totalorder %s13, 0
    %p96 = por %p94, %p95
    %p97 = scmp.ne.s32.totalorder %s89, %s91
    %p98 = scmp.eq.s32.totalorder %s18, 1
    %p99 = por %p97, %p98
    %p100 = scmp.ne.s32.totalorder %s91, %s92
    %p101 = scmp.eq.s32.totalorder %s18, 0
    %p102 = por %p100, %p101
    %p103 = scmp.ne.s32.totalorder %s91, %s92
    %p104 = scmp.eq.s32.totalorder %s19, 1
    %p105 = por %p103, %p104
    %p107 = scmp.ne.s32.totalorder %s92, %s106
    %p108 = scmp.eq.s32.totalorder %s19, 0
    %p109 = por %p107, %p108
    %s111 = sadd.s32 %s110, 1
    %p114 = scmp.eq.s32.totalorder %s13, 1
    %p115 = scmp.ne.s32.totalorder %s110, %s112
    %p116 = scmp.eq.s32.totalorder %s13, 0
    %p117 = por %p115, %p116
    %p118 = scmp.ne.s32.totalorder %s110, %s112
    %p119 = scmp.eq.s32.totalorder %s18, 1
    %p120 = por %p118, %p119
    %p121 = scmp.ne.s32.totalorder %s112, %s113
    %p122 = scmp.eq.s32.totalorder %s18, 0
    %p123 = por %p121, %p122
    %p124 = scmp.ne.s32.totalorder %s112, %s113
    %p125 = scmp.eq.s32.totalorder %s19, 1
    %p126 = por %p124, %p125
    %p128 = scmp.ne.s32.totalorder %s113, %s127
    %p129 = scmp.eq.s32.totalorder %s19, 0
    %p130 = por %p128, %p129
    %s132 = sadd.s32 %s131, 1
    %p135 = scmp.eq.s32.totalorder %s13, 1
    %p136 = scmp.ne.s32.totalorder %s131, %s133
    %p137 = scmp.eq.s32.totalorder %s13, 0
    %p138 = por %p136, %p137
    %p139 = scmp.ne.s32.totalorder %s131, %s133
    %p140 = scmp.eq.s32.totalorder %s18, 1
    %p141 = por %p139, %p140
    %p142 = scmp.ne.s32.totalorder %s133, %s134
    %p143 = scmp.eq.s32.totalorder %s18, 0
    %p144 = por %p142, %p143
    %p145 = scmp.ne.s32.totalorder %s133, %s134
    %p146 = scmp.eq.s32.totalorder %s19, 1
    %p147 = por %p145, %p146
    %p149 = scmp.ne.s32.totalorder %s134, %s148
    %p150 = scmp.eq.s32.totalorder %s19, 0
    %p151 = por %p149, %p150
    %s153 = sadd.s32 %s152, 1
    %p156 = scmp.eq.s32.totalorder %s13, 1
    %p157 = scmp.ne.s32.totalorder %s152, %s154
    %p158 = scmp.eq.s32.totalorder %s13, 0
    %p159 = por %p157, %p158
    %p160 = scmp.ne.s32.totalorder %s152, %s154
    %p161 = scmp.eq.s32.totalorder %s18, 1
    %p162 = por %p160, %p161
    %p163 = scmp.ne.s32.totalorder %s154, %s155
    %p164 = scmp.eq.s32.totalorder %s18, 0
    %p165 = por %p163, %p164
    %p166 = scmp.ne.s32.totalorder %s154, %s155
    %p167 = scmp.eq.s32.totalorder %s19, 1
    %p168 = por %p166, %p167
    %p170 = scmp.ne.s32.totalorder %s155, %s169
    %p171 = scmp.eq.s32.totalorder %s19, 0
    %p172 = por %p170, %p171
    %s173 = ssub.s32 %s13, %s20
    %p174 = scmp.eq.s32.totalorder %s173, 0
    %s176 = sadd.s32 %s175, 1
    %s177 = scalar_select %p174, %s175, %s176
    %p180 = pneg %p174
    %p181 = scmp.eq.s32.totalorder %s13, 1
    %p182 = por %p180, %p181
    %p183 = scmp.ne.s32.totalorder %s175, %s178
    %p184 = scmp.eq.s32.totalorder %s13, 0
    %p185 = por %p183, %p184
    %p186 = scmp.ne.s32.totalorder %s175, %s178
    %p187 = scmp.eq.s32.totalorder %s18, 1
    %p188 = por %p186, %p187
    %p189 = scmp.ne.s32.totalorder %s178, %s179
    %p190 = scmp.eq.s32.totalorder %s18, 0
    %p191 = por %p189, %p190
    %p192 = scmp.ne.s32.totalorder %s178, %s179
    %p193 = scmp.eq.s32.totalorder %s19, 1
    %p194 = por %p192, %p193
    %p196 = scmp.ne.s32.totalorder %s179, %s195
    %p197 = scmp.eq.s32.totalorder %s19, 0
    %p198 = por %p196, %p197
    %p199 = scmp.le.s32.totalorder 1, %s13
    %p200 = scmp.lt.s32.totalorder %s13, 3
    %p201 = pnand %p199, %p200
    %p202 = pneg %p201
    // Predicated region
    $region9: #{_mlp_forward.1} parent=5 // pred_check
      _
    $region10: #{_mlp_forward.1} parent=5 // pred_check_branch
      %204 = sbr.rel (%p201) target = $region12
    $region11: #{_mlp_forward.1} parent=5 // pred_region
      %s205 = ssub.s32 %s13, 1
      // Predicated region
      $region13: #{_mlp_forward.1} parent=11 // pred_check
        %p206 = pneg %p60
      $region14: #{_mlp_forward.1} parent=11 // pred_check_branch
        %208 = sbr.rel (%p206) target = $region16
      $region15: #{_mlp_forward.1} parent=11 // pred_region
        _
      $region16: #{_mlp_forward.1} parent=11 // pred_fallthru
        _
      // Predicated region
      $region17: #{_mlp_forward.1} parent=11 // pred_check
        %p209 = pneg %p81
      $region18: #{_mlp_forward.1} parent=11 // pred_check_branch
        %211 = sbr.rel (%p209) target = $region20
      $region19: #{_mlp_forward.1} parent=11 // pred_region
        _
      $region20: #{_mlp_forward.1} parent=11 // pred_fallthru
        _
      // Predicated region
      $region21: #{_mlp_forward.1} parent=11 // pred_check
        %p212 = pneg %p102
      $region22: #{_mlp_forward.1} parent=11 // pred_check_branch
        %214 = sbr.rel (%p212) target = $region24
      $region23: #{_mlp_forward.1} parent=11 // pred_region
        _
      $region24: #{_mlp_forward.1} parent=11 // pred_fallthru
        _
      // Predicated region
      $region25: #{_mlp_forward.1} parent=11 // pred_check
        %p215 = pneg %p123
      $region26: #{_mlp_forward.1} parent=11 // pred_check_branch
        %217 = sbr.rel (%p215) target = $region28
      $region27: #{_mlp_forward.1} parent=11 // pred_region
        _
      $region28: #{_mlp_forward.1} parent=11 // pred_fallthru
        _
      // Predicated region
      $region29: #{_mlp_forward.1} parent=11 // pred_check
        %p218 = pneg %p144
      $region30: #{_mlp_forward.1} parent=11 // pred_check_branch
        %220 = sbr.rel (%p218) target = $region32
      $region31: #{_mlp_forward.1} parent=11 // pred_region
        _
      $region32: #{_mlp_forward.1} parent=11 // pred_fallthru
        _
      // Predicated region
      $region33: #{_mlp_forward.1} parent=11 // pred_check
        %p221 = pneg %p165
      $region34: #{_mlp_forward.1} parent=11 // pred_check_branch
        %223 = sbr.rel (%p221) target = $region36
      $region35: #{_mlp_forward.1} parent=11 // pred_region
        _
      $region36: #{_mlp_forward.1} parent=11 // pred_fallthru
        _
    $region12: #{_mlp_forward.1} parent=5 // pred_fallthru
      _
    %p224 = scmp.lt.s32.totalorder %s13, 2
    // Predicated region
    $region37: #{_mlp_forward.1} parent=5 // pred_check
      %p225 = pneg %p224
    $region38: #{_mlp_forward.1} parent=5 // pred_check_branch
      %227 = sbr.rel (%p225) target = $region40
    $region39: #{_mlp_forward.1} parent=5 // pred_region
      // Predicated region
      $region41: #{_mlp_forward.1} parent=39 // pred_check
        %p228 = pneg %p33
      $region42: #{_mlp_forward.1} parent=39 // pred_check_branch
        %230 = sbr.rel (%p228) target = $region44
      $region43: #{_mlp_forward.1} parent=39 // pred_region
        %s231 = smul.u32 19, %s13
        %p232 = scmp.lt.s32.totalorder %s231, 37
        %s233 = scalar_select %p232, %s231, 37
        %s234 = smul.addr %s233, 8
        %s235 = scalar_lea.vmem %s0, %s234
        %s236 = smul.u32 19, %s13
      $region44: #{_mlp_forward.1} parent=39 // pred_fallthru
        _
    $region40: #{_mlp_forward.1} parent=5 // pred_fallthru
      _
    %p237 = scmp.le.s32.totalorder 1, %s13
    %p238 = scmp.lt.s32.totalorder %s13, 3
    %p239 = pnand %p237, %p238
    %p240 = pneg %p239
    // Predicated region
    $region45: #{_mlp_forward.1} parent=5 // pred_check
      _
    $region46: #{_mlp_forward.1} parent=5 // pred_check_branch
      %242 = sbr.rel (%p239) target = $region48
    $region47: #{_mlp_forward.1} parent=5 // pred_region
      %s243 = ssub.s32 %s13, 1
      %s244 = smul.u32 19, %s18
      %p245 = scmp.lt.s32.totalorder %s244, 37
      %s246 = scalar_select %p245, %s244, 37
      %s247 = smul.addr %s246, 8
      %s248 = scalar_lea.vmem %s0, %s247
      %p249 = pneg %p39
      %p250 = pneg %p36
      %p251 = pneg %p60
      %p252 = pneg %p57
      %p253 = pneg %p81
      %p254 = pneg %p78
      %p255 = pneg %p102
      %p256 = pneg %p99
      %p257 = pneg %p123
      %p258 = pneg %p120
      %p259 = pneg %p144
      %p260 = pneg %p141
      %p261 = pneg %p165
      %p262 = pneg %p162
      %p263 = pneg %p191
      %p264 = pneg %p188
      %s265 = smul.u32 19, %s18
      %p266 = scmp.lt.s32.totalorder %s265, 37
      %s267 = scalar_select %p266, %s265, 37
      %s268 = smul.addr %s267, 8
      %s269 = scalar_lea.vmem %s7, %s268
      %s270 = smul.u32 19, %s18
      %p271 = scmp.lt.s32.totalorder %s270, 37
      %s272 = scalar_select %p271, %s270, 37
      %s273 = smul.addr %s272, 8
      %s274 = scalar_lea.vmem %s0, %s273
      %s275 = smul.u32 19, %s18
      %s276 = smul.u32 19, %s18
      %p277 = scmp.lt.s32.totalorder %s276, 37
      %s278 = scalar_select %p277, %s276, 37
      %s279 = smul.addr %s278, 8
      %s280 = scalar_lea.vmem %s7, %s279
      %s281 = smul.u32 19, %s18
      %v282 = vld [vmem:[%s274] sm:$0xff]
      %v283 = vld [vmem:[%s274 + $0x8] sm:$0xff]
      %v284 = vld [vmem:[%s274 + $0x10] sm:$0xff]
      %v285 = vld [vmem:[%s274 + $0x18] sm:$0xff]
      %v286 = vld [vmem:[%s274 + $0x20] sm:$0xff]
      %v287 = vld [vmem:[%s274 + $0x28] sm:$0xff]
      %v288 = vld [vmem:[%s274 + $0x30] sm:$0xff]
      %v289 = vld [vmem:[%s274 + $0x38] sm:$0xff]
      %v290 = vld [vmem:[%s274 + $0x40] sm:$0xff]
      %v291 = vld [vmem:[%s274 + $0x48] sm:$0xff]
      %v292 = vld [vmem:[%s274 + $0x50] sm:$0xff]
      %v293 = vld [vmem:[%s274 + $0x58] sm:$0xff]
      %v294 = vld [vmem:[%s274 + $0x60] sm:$0xff]
      %v295 = vld [vmem:[%s274 + $0x68] sm:$0xff]
      %v296 = vld [vmem:[%s274 + $0x70] sm:$0xff]
      %v297 = vld [vmem:[%s274 + $0x78] sm:$0xff]
      %v298 = vld [vmem:[%s274 + $0x80] sm:$0xff]
      %v299 = vld [vmem:[%s274 + $0x88] sm:$0xff]
      %v300 = vld [vmem:[%s274 + $0x90] sm:$0xff]
      %v301 = vld [vmem:[%s1] sm:$0xff]
      %v302 = vld [vmem:[%s1 + $0x8] sm:$0xff]
      %v303 = vld [vmem:[%s1 + $0x10] sm:$0xff]
      %v304 = vld [vmem:[%s1 + $0x18] sm:$0xff]
      %v305 = vld [vmem:[%s2] sm:$0x1]
      %v307 = vperm.slane %v305, 0
      %vm309 = vcmask 261120
      %v311 = vsel %vm309, %v282, 0
      %v314 = vsel %vm309, %v283, 0
      %v317 = vsel %vm309, %v284, 0
      %v320 = vsel %vm309, %v285, 0
      %v323 = vsel %vm309, %v286, 0
      %v326 = vsel %vm309, %v287, 0
      %v329 = vsel %vm309, %v288, 0
      %v332 = vsel %vm309, %v289, 0
      %v335 = vsel %vm309, %v290, 0
      %v338 = vsel %vm309, %v291, 0
      %v341 = vsel %vm309, %v292, 0
      %v344 = vsel %vm309, %v293, 0
      %v347 = vsel %vm309, %v294, 0
      %v350 = vsel %vm309, %v295, 0
      %v353 = vsel %vm309, %v296, 0
      %v356 = vsel %vm309, %v297, 0
      %v359 = vsel %vm309, %v298, 0
      %v362 = vsel %vm309, %v299, 0
      %v365 = vsel %vm309, %v300, 0
      %367 = vmatpush.msra.mxu0 0.0
      %368 = vmatpush.msra.mxu0 0.0
      %369 = vmatpush.msra.mxu0 0.0
      %370 = vmatpush.msra.mxu0 0.0
      %371 = vmatpush.msra.mxu0 0.0
      %372 = vmatpush.msra.mxu0 0.0
      %373 = vmatpush.msra.mxu0 0.0
      %374 = vmatpush.msra.mxu0 0.0
      %375 = vmatpush.msra.mxu0 0.0
      %376 = vmatpush.msra.mxu0 0.0
      %377 = vmatpush.msra.mxu0 0.0
      %378 = vmatpush.msra.mxu0 0.0
      %379 = vmatpush.msra.mxu0 %v304
      %380 = vmatpush.msra.mxu0 %v303
      %381 = vmatpush.msra.mxu0 %v302
      %382 = vmatpush.msra.mxu0 %v301
      %383 = vmatmul.f32.gmra.mxu0 %v311
      %v384 = vpop.f32.mrf.mxu0
      %v385 = vadd.f32 %v307, %v384
      %386 = vmatmul.f32.gmra.mxu0 %v314
      %v387 = vpop.f32.mrf.mxu0
      %v388 = vadd.f32 %v307, %v387
      %389 = vmatmul.f32.gmra.mxu0 %v317
      %v390 = vpop.f32.mrf.mxu0
      %v391 = vadd.f32 %v307, %v390
      %392 = vmatmul.f32.gmra.mxu0 %v320
      %v393 = vpop.f32.mrf.mxu0
      %v394 = vadd.f32 %v307, %v393
      %395 = vmatmul.f32.gmra.mxu0 %v323
      %v396 = vpop.f32.mrf.mxu0
      %v397 = vadd.f32 %v307, %v396
      %398 = vmatmul.f32.gmra.mxu0 %v326
      %v399 = vpop.f32.mrf.mxu0
      %v400 = vadd.f32 %v307, %v399
      %401 = vmatmul.f32.gmra.mxu0 %v329
      %v402 = vpop.f32.mrf.mxu0
      %v403 = vadd.f32 %v307, %v402
      %404 = vmatmul.f32.gmra.mxu0 %v332
      %v405 = vpop.f32.mrf.mxu0
      %v406 = vadd.f32 %v307, %v405
      %407 = vmatmul.f32.gmra.mxu0 %v335
      %v408 = vpop.f32.mrf.mxu0
      %v409 = vadd.f32 %v307, %v408
      %410 = vmatmul.f32.gmra.mxu0 %v338
      %v411 = vpop.f32.mrf.mxu0
      %v412 = vadd.f32 %v307, %v411
      %413 = vmatmul.f32.gmra.mxu0 %v341
      %v414 = vpop.f32.mrf.mxu0
      %v415 = vadd.f32 %v307, %v414
      %416 = vmatmul.f32.gmra.mxu0 %v344
      %v417 = vpop.f32.mrf.mxu0
      %v418 = vadd.f32 %v307, %v417
      %419 = vmatmul.f32.gmra.mxu0 %v347
      %v420 = vpop.f32.mrf.mxu0
      %v421 = vadd.f32 %v307, %v420
      %422 = vmatmul.f32.gmra.mxu0 %v350
      %v423 = vpop.f32.mrf.mxu0
      %v424 = vadd.f32 %v307, %v423
      %425 = vmatmul.f32.gmra.mxu0 %v353
      %v426 = vpop.f32.mrf.mxu0
      %v427 = vadd.f32 %v307, %v426
      %428 = vmatmul.f32.gmra.mxu0 %v356
      %v429 = vpop.f32.mrf.mxu0
      %v430 = vadd.f32 %v307, %v429
      %431 = vmatmul.f32.gmra.mxu0 %v359
      %v432 = vpop.f32.mrf.mxu0
      %v433 = vadd.f32 %v307, %v432
      %434 = vmatmul.f32.gmra.mxu0 %v362
      %v435 = vpop.f32.mrf.mxu0
      %v436 = vadd.f32 %v307, %v435
      %437 = vmatmul.f32.gmra.mxu0 %v365
      %v438 = vpop.f32.mrf.mxu0
      %v439 = vadd.f32 %v307, %v438
      %440 = vdwg.mxu0
      %v441 = vmax.f32 %v385, 0.0
      %v442 = vmax.f32 %v388, 0.0
      %v443 = vmax.f32 %v391, 0.0
      %v444 = vmax.f32 %v394, 0.0
      %v445 = vmax.f32 %v397, 0.0
      %v446 = vmax.f32 %v400, 0.0
      %v447 = vmax.f32 %v403, 0.0
      %v448 = vmax.f32 %v406, 0.0
      %v449 = vmax.f32 %v409, 0.0
      %v450 = vmax.f32 %v412, 0.0
      %v451 = vmax.f32 %v415, 0.0
      %v452 = vmax.f32 %v418, 0.0
      %v453 = vmax.f32 %v421, 0.0
      %v454 = vmax.f32 %v424, 0.0
      %v455 = vmax.f32 %v427, 0.0
      %v456 = vmax.f32 %v430, 0.0
      %v457 = vmax.f32 %v433, 0.0
      %v458 = vmax.f32 %v436, 0.0
      %v459 = vmax.f32 %v439, 0.0
      %v460 = vld [vmem:[%s3] sm:$0xff]
      %v461 = vld [vmem:[%s3 + $0x8] sm:$0xff]
      %v462 = vld [vmem:[%s3 + $0x10] sm:$0xff]
      %v463 = vld [vmem:[%s3 + $0x18] sm:$0xff]
      %v464 = vld [vmem:[%s3 + $0x20] sm:$0xff]
      %v465 = vld [vmem:[%s3 + $0x28] sm:$0xff]
      %v466 = vld [vmem:[%s3 + $0x30] sm:$0xff]
      %v467 = vld [vmem:[%s3 + $0x38] sm:$0xff]
      %v468 = vld [vmem:[%s4] sm:$0x1]
      %v470 = vperm.slane %v468, 0
      %vm472 = vcmask 523264
      %v474 = vsel %vm472, %v441, 0
      %v477 = vsel %vm472, %v442, 0
      %v480 = vsel %vm472, %v443, 0
      %v483 = vsel %vm472, %v444, 0
      %v486 = vsel %vm472, %v445, 0
      %v489 = vsel %vm472, %v446, 0
      %v492 = vsel %vm472, %v447, 0
      %v495 = vsel %vm472, %v448, 0
      %v498 = vsel %vm472, %v449, 0
      %v501 = vsel %vm472, %v450, 0
      %v504 = vsel %vm472, %v451, 0
      %v507 = vsel %vm472, %v452, 0
      %v510 = vsel %vm472, %v453, 0
      %v513 = vsel %vm472, %v454, 0
      %v516 = vsel %vm472, %v455, 0
      %v519 = vsel %vm472, %v456, 0
      %v522 = vsel %vm472, %v457, 0
      %v525 = vsel %vm472, %v458, 0
      %v528 = vsel %vm472, %v459, 0
      %530 = vmatpush.msra.mxu0 0.0
      %531 = vmatpush.msra.mxu0 0.0
      %532 = vmatpush.msra.mxu0 0.0
      %533 = vmatpush.msra.mxu0 0.0
      %534 = vmatpush.msra.mxu0 0.0
      %535 = vmatpush.msra.mxu0 0.0
      %536 = vmatpush.msra.mxu0 0.0
      %537 = vmatpush.msra.mxu0 0.0
      %538 = vmatpush.msra.mxu0 %v467
      %539 = vmatpush.msra.mxu0 %v466
      %540 = vmatpush.msra.mxu0 %v465
      %541 = vmatpush.msra.mxu0 %v464
      %542 = vmatpush.msra.mxu0 %v463
      %543 = vmatpush.msra.mxu0 %v462
      %544 = vmatpush.msra.mxu0 %v461
      %545 = vmatpush.msra.mxu0 %v460
      %546 = vmatmul.f32.gmra.mxu0 %v474
      %v547 = vpop.f32.mrf.mxu0
      %v548 = vadd.f32 %v470, %v547
      %549 = vmatmul.f32.gmra.mxu0 %v477
      %v550 = vpop.f32.mrf.mxu0
      %v551 = vadd.f32 %v470, %v550
      %552 = vmatmul.f32.gmra.mxu0 %v480
      %v553 = vpop.f32.mrf.mxu0
      %v554 = vadd.f32 %v470, %v553
      %555 = vmatmul.f32.gmra.mxu0 %v483
      %v556 = vpop.f32.mrf.mxu0
      %v557 = vadd.f32 %v470, %v556
      %558 = vmatmul.f32.gmra.mxu0 %v486
      %v559 = vpop.f32.mrf.mxu0
      %v560 = vadd.f32 %v470, %v559
      %561 = vmatmul.f32.gmra.mxu0 %v489
      %v562 = vpop.f32.mrf.mxu0
      %v563 = vadd.f32 %v470, %v562
      %564 = vmatmul.f32.gmra.mxu0 %v492
      %v565 = vpop.f32.mrf.mxu0
      %v566 = vadd.f32 %v470, %v565
      %567 = vmatmul.f32.gmra.mxu0 %v495
      %v568 = vpop.f32.mrf.mxu0
      %v569 = vadd.f32 %v470, %v568
      %570 = vmatmul.f32.gmra.mxu0 %v498
      %v571 = vpop.f32.mrf.mxu0
      %v572 = vadd.f32 %v470, %v571
      %573 = vmatmul.f32.gmra.mxu0 %v501
      %v574 = vpop.f32.mrf.mxu0
      %v575 = vadd.f32 %v470, %v574
      %576 = vmatmul.f32.gmra.mxu0 %v504
      %v577 = vpop.f32.mrf.mxu0
      %v578 = vadd.f32 %v470, %v577
      %579 = vmatmul.f32.gmra.mxu0 %v507
      %v580 = vpop.f32.mrf.mxu0
      %v581 = vadd.f32 %v470, %v580
      %582 = vmatmul.f32.gmra.mxu0 %v510
      %v583 = vpop.f32.mrf.mxu0
      %v584 = vadd.f32 %v470, %v583
      %585 = vmatmul.f32.gmra.mxu0 %v513
      %v586 = vpop.f32.mrf.mxu0
      %v587 = vadd.f32 %v470, %v586
      %588 = vmatmul.f32.gmra.mxu0 %v516
      %v589 = vpop.f32.mrf.mxu0
      %v590 = vadd.f32 %v470, %v589
      %591 = vmatmul.f32.gmra.mxu0 %v519
      %v592 = vpop.f32.mrf.mxu0
      %v593 = vadd.f32 %v470, %v592
      %594 = vmatmul.f32.gmra.mxu0 %v522
      %v595 = vpop.f32.mrf.mxu0
      %v596 = vadd.f32 %v470, %v595
      %597 = vmatmul.f32.gmra.mxu0 %v525
      %v598 = vpop.f32.mrf.mxu0
      %v599 = vadd.f32 %v470, %v598
      %600 = vmatmul.f32.gmra.mxu0 %v528
      %v601 = vpop.f32.mrf.mxu0
      %v602 = vadd.f32 %v470, %v601
      %603 = vdwg.mxu0
      %v604 = vmax.f32 %v548, 0.0
      %v605 = vmax.f32 %v551, 0.0
      %v606 = vmax.f32 %v554, 0.0
      %v607 = vmax.f32 %v557, 0.0
      %v608 = vmax.f32 %v560, 0.0
      %v609 = vmax.f32 %v563, 0.0
      %v610 = vmax.f32 %v566, 0.0
      %v611 = vmax.f32 %v569, 0.0
      %v612 = vmax.f32 %v572, 0.0
      %v613 = vmax.f32 %v575, 0.0
      %v614 = vmax.f32 %v578, 0.0
      %v615 = vmax.f32 %v581, 0.0
      %v616 = vmax.f32 %v584, 0.0
      %v617 = vmax.f32 %v587, 0.0
      %v618 = vmax.f32 %v590, 0.0
      %v619 = vmax.f32 %v593, 0.0
      %v620 = vmax.f32 %v596, 0.0
      %v621 = vmax.f32 %v599, 0.0
      %v622 = vmax.f32 %v602, 0.0
      %v623 = vld [vmem:[%s5] sm:$0xff]
      %v624 = vld [vmem:[%s5 + $0x8] sm:$0xff]
      %v625 = vld [vmem:[%s5 + $0x10] sm:$0xff]
      %v626 = vld [vmem:[%s5 + $0x18] sm:$0xff]
      %v627 = vld [vmem:[%s5 + $0x20] sm:$0xff]
      %v628 = vld [vmem:[%s5 + $0x28] sm:$0xff]
      %v629 = vld [vmem:[%s5 + $0x30] sm:$0xff]
      %v630 = vld [vmem:[%s5 + $0x38] sm:$0xff]
      %v631 = vld [vmem:[%s6] sm:$0x1]
      %v633 = vperm.slane %v631, 0
      %v636 = vsel %vm472, %v604, 0
      %v639 = vsel %vm472, %v605, 0
      %v642 = vsel %vm472, %v606, 0
      %v645 = vsel %vm472, %v607, 0
      %v648 = vsel %vm472, %v608, 0
      %v651 = vsel %vm472, %v609, 0
      %v654 = vsel %vm472, %v610, 0
      %v657 = vsel %vm472, %v611, 0
      %v660 = vsel %vm472, %v612, 0
      %v663 = vsel %vm472, %v613, 0
      %v666 = vsel %vm472, %v614, 0
      %v669 = vsel %vm472, %v615, 0
      %v672 = vsel %vm472, %v616, 0
      %v675 = vsel %vm472, %v617, 0
      %v678 = vsel %vm472, %v618, 0
      %v681 = vsel %vm472, %v619, 0
      %v684 = vsel %vm472, %v620, 0
      %v687 = vsel %vm472, %v621, 0
      %v690 = vsel %vm472, %v622, 0
      %692 = vmatpush.msra.mxu0 0.0
      %693 = vmatpush.msra.mxu0 0.0
      %694 = vmatpush.msra.mxu0 0.0
      %695 = vmatpush.msra.mxu0 0.0
      %696 = vmatpush.msra.mxu0 0.0
      %697 = vmatpush.msra.mxu0 0.0
      %698 = vmatpush.msra.mxu0 0.0
      %699 = vmatpush.msra.mxu0 0.0
      %700 = vmatpush.msra.mxu0 %v630
      %701 = vmatpush.msra.mxu0 %v629
      %702 = vmatpush.msra.mxu0 %v628
      %703 = vmatpush.msra.mxu0 %v627
      %704 = vmatpush.msra.mxu0 %v626
      %705 = vmatpush.msra.mxu0 %v625
      %706 = vmatpush.msra.mxu0 %v624
      %707 = vmatpush.msra.mxu0 %v623
      %708 = vmatmul.f32.gmra.mxu0 %v636
      %v709 = vpop.f32.mrf.mxu0
      %v710 = vadd.f32 %v633, %v709
      %711 = vmatmul.f32.gmra.mxu0 %v639
      %v712 = vpop.f32.mrf.mxu0
      %v713 = vadd.f32 %v633, %v712
      %714 = vmatmul.f32.gmra.mxu0 %v642
      %v715 = vpop.f32.mrf.mxu0
      %v716 = vadd.f32 %v633, %v715
      %717 = vmatmul.f32.gmra.mxu0 %v645
      %v718 = vpop.f32.mrf.mxu0
      %v719 = vadd.f32 %v633, %v718
      %720 = vmatmul.f32.gmra.mxu0 %v648
      %v721 = vpop.f32.mrf.mxu0
      %v722 = vadd.f32 %v633, %v721
      %723 = vmatmul.f32.gmra.mxu0 %v651
      %v724 = vpop.f32.mrf.mxu0
      %v725 = vadd.f32 %v633, %v724
      %726 = vmatmul.f32.gmra.mxu0 %v654
      %v727 = vpop.f32.mrf.mxu0
      %v728 = vadd.f32 %v633, %v727
      %729 = vmatmul.f32.gmra.mxu0 %v657
      %v730 = vpop.f32.mrf.mxu0
      %v731 = vadd.f32 %v633, %v730
      %732 = vmatmul.f32.gmra.mxu0 %v660
      %v733 = vpop.f32.mrf.mxu0
      %v734 = vadd.f32 %v633, %v733
      %735 = vmatmul.f32.gmra.mxu0 %v663
      %v736 = vpop.f32.mrf.mxu0
      %v737 = vadd.f32 %v633, %v736
      %738 = vmatmul.f32.gmra.mxu0 %v666
      %v739 = vpop.f32.mrf.mxu0
      %v740 = vadd.f32 %v633, %v739
      %741 = vmatmul.f32.gmra.mxu0 %v669
      %v742 = vpop.f32.mrf.mxu0
      %v743 = vadd.f32 %v633, %v742
      %744 = vmatmul.f32.gmra.mxu0 %v672
      %v745 = vpop.f32.mrf.mxu0
      %v746 = vadd.f32 %v633, %v745
      %747 = vmatmul.f32.gmra.mxu0 %v675
      %v748 = vpop.f32.mrf.mxu0
      %v749 = vadd.f32 %v633, %v748
      %750 = vmatmul.f32.gmra.mxu0 %v678
      %v751 = vpop.f32.mrf.mxu0
      %v752 = vadd.f32 %v633, %v751
      %753 = vmatmul.f32.gmra.mxu0 %v681
      %v754 = vpop.f32.mrf.mxu0
      %v755 = vadd.f32 %v633, %v754
      %756 = vmatmul.f32.gmra.mxu0 %v684
      %v757 = vpop.f32.mrf.mxu0
      %v758 = vadd.f32 %v633, %v757
      %759 = vmatmul.f32.gmra.mxu0 %v687
      %v760 = vpop.f32.mrf.mxu0
      %v761 = vadd.f32 %v633, %v760
      %762 = vmatmul.f32.gmra.mxu0 %v690
      %v763 = vpop.f32.mrf.mxu0
      %v764 = vadd.f32 %v633, %v763
      %765 = vdwg.mxu0
      %vm766 = vcmask 130048
      %767 = vst.msk [vmem:[%s280] sm:$0xff] %vm766, %v710
      %768 = vst.msk [vmem:[%s280 + $0x8] sm:$0xff] %vm766, %v713
      %769 = vst.msk [vmem:[%s280 + $0x10] sm:$0xff] %vm766, %v716
      %770 = vst.msk [vmem:[%s280 + $0x18] sm:$0xff] %vm766, %v719
      %771 = vst.msk [vmem:[%s280 + $0x20] sm:$0xff] %vm766, %v722
      %772 = vst.msk [vmem:[%s280 + $0x28] sm:$0xff] %vm766, %v725
      %773 = vst.msk [vmem:[%s280 + $0x30] sm:$0xff] %vm766, %v728
      %774 = vst.msk [vmem:[%s280 + $0x38] sm:$0xff] %vm766, %v731
      %775 = vst.msk [vmem:[%s280 + $0x40] sm:$0xff] %vm766, %v734
      %776 = vst.msk [vmem:[%s280 + $0x48] sm:$0xff] %vm766, %v737
      %777 = vst.msk [vmem:[%s280 + $0x50] sm:$0xff] %vm766, %v740
      %778 = vst.msk [vmem:[%s280 + $0x58] sm:$0xff] %vm766, %v743
      %779 = vst.msk [vmem:[%s280 + $0x60] sm:$0xff] %vm766, %v746
      %780 = vst.msk [vmem:[%s280 + $0x68] sm:$0xff] %vm766, %v749
      %781 = vst.msk [vmem:[%s280 + $0x70] sm:$0xff] %vm766, %v752
      %782 = vst.msk [vmem:[%s280 + $0x78] sm:$0xff] %vm766, %v755
      %783 = vst.msk [vmem:[%s280 + $0x80] sm:$0xff] %vm766, %v758
      %784 = vst.msk [vmem:[%s280 + $0x88] sm:$0xff] %vm766, %v761
      %785 = vst.msk [vmem:[%s280 + $0x90] sm:$0xff] %vm766, %v764
      %s786 = smul.u32 19, %s18
      %p787 = scmp.lt.s32.totalorder %s786, 37
      %s788 = scalar_select %p787, %s786, 37
      %s789 = smul.addr %s788, 8
      %s790 = scalar_lea.vmem %s7, %s789
      // Predicated region
      $region49: #{_mlp_forward.1} parent=47 // pred_check
        %p791 = pneg %p188
      $region50: #{_mlp_forward.1} parent=47 // pred_check_branch
        %793 = sbr.rel (%p791) target = $region52
      $region51: #{_mlp_forward.1} parent=47 // pred_region
        %s794 = smul.u32 19, %s18
      $region52: #{_mlp_forward.1} parent=47 // pred_fallthru
        _
    $region48: #{_mlp_forward.1} parent=5 // pred_fallthru
      _
    %p795 = scmp.le.s32.totalorder 2, %s13
    // Predicated region
    $region53: #{_mlp_forward.1} parent=5 // pred_check
      %p796 = pneg %p795
    $region54: #{_mlp_forward.1} parent=5 // pred_check_branch
      %798 = sbr.rel (%p796) target = $region56
    $region55: #{_mlp_forward.1} parent=5 // pred_region
      %s799 = ssub.s32 %s13, 2
      // Predicated region
      $region57: #{_mlp_forward.1} parent=55 // pred_check
        %p800 = pneg %p194
      $region58: #{_mlp_forward.1} parent=55 // pred_check_branch
        %802 = sbr.rel (%p800) target = $region60
      $region59: #{_mlp_forward.1} parent=55 // pred_region
        %s803 = smul.u32 19, %s19
        %p804 = scmp.lt.s32.totalorder %s803, 37
        %s805 = scalar_select %p804, %s803, 37
        %s806 = smul.addr %s805, 8
        %s807 = scalar_lea.vmem %s7, %s806
      $region60: #{_mlp_forward.1} parent=55 // pred_fallthru
        _
    $region56: #{_mlp_forward.1} parent=5 // pred_fallthru
      _
  $region6: #{_mlp_forward.1} parent=0 // loop_footer
    %s17 = sadd.s32 1, %s13
  $region7: #{_mlp_forward.1} parent=0 // loop_footer_branch
    %12 = sbr.rel target = $region3
  $region8: #{_mlp_forward.1} parent=0 // loop_exit
    _

</llo_original>
